<compile_context>
chip_gen: v6e
topology: v6e:2x2x1
jax: 0.10.0
libtpu: 0.0.40
codegen_flags: <defaults>
</compile_context>

<pallas_src>
import functools

import jax
import jax.numpy as jnp
from jax.experimental import pallas as pl
from jax.experimental.pallas import tpu as pltpu


def _double_conv_kernel(col_ref, x_ref, w1_ref, b1_ref, w2_ref, b2_ref, o_ref,
                        s1_ref, s2_ref, *, W):
    # col_ref: (1, HW) int32       column index (p mod W) of every flattened spatial position
    # x_ref  : (1, Cin, HW) bf16   one batch element, channel-major, spatial flattened (= NCHW reshaped)
    # w*_ref : (3, Cout, 3*Cin) bf16  with w*[kh, co, kw*Cin + ci] = conv weight [co, ci, kh, kw]
    # b*_ref : (Cout, 1) f32
    # o_ref  : (1, Cout, HW) f32
    # s*_ref : (3*C, HW + 2*W) bf16 scratch holding the three dw-shifted, wrap-masked copies of the
    #          stage source ("band" kw lives at rows [kw*C, (kw+1)*C)).  The bands are placed so
    #          that reading lanes [kh*W, kh*W + HW) of the whole slab yields tap (kh, kw) for every
    #          output position, with the unwritten halo lanes doubling as top/bottom zero padding.
    HW = x_ref.shape[2]
    HWQ = HW + 2 * W

    col = col_ref[...]
    # Source-aligned wrap masks: an element in the last (first) column of its image row must not
    # contribute through the dw=-1 (dw=+1) tap of the neighbouring output in the next (previous)
    # image row.
    m_not_last = (col != (W - 1)).astype(jnp.bfloat16)    # applied to the dw = -1 band
    m_not_first = (col != 0).astype(jnp.bfloat16)         # applied to the dw = +1 band

    def zero_halos(s_ref):
        rows = s_ref.shape[0]
        halo = jnp.zeros((rows, W + 1), jnp.bfloat16)
        s_ref[:, :W + 1] = halo                           # covers every band's left halo
        s_ref[:, HWQ - (W + 1):HWQ] = halo                # covers every band's right halo

    def fill_bands(s_ref, src, c):
        # src: (c, HW) bf16 stage source.  Writes come AFTER zero_halos, so the small overlap with
        # the zeroed superset is simply overwritten with valid interior data.
        s_ref[0 * c:1 * c, W + 1:W + 1 + HW] = src * m_not_last     # dw = -1
        s_ref[1 * c:2 * c, W:W + HW] = src                          # dw =  0 (never wraps)
        s_ref[2 * c:3 * c, W - 1:W - 1 + HW] = src * m_not_first    # dw = +1

    def conv_relu(s_ref, w_ref, b_ref):
        cout = w_ref.shape[1]
        acc = jnp.zeros((cout, HW), jnp.float32)
        for kh in range(3):  # 3 MXU matmuls, K = 3*C, N = HW (lane-dense), f32 accumulation
            acc = acc + jnp.dot(w_ref[kh], s_ref[:, kh * W:kh * W + HW],
                                preferred_element_type=jnp.float32)
        return jnp.maximum(acc + b_ref[...], 0.0)          # f32 bias + ReLU epilogue

    zero_halos(s1_ref)
    zero_halos(s2_ref)

    # ---- Stage 1 ----
    fill_bands(s1_ref, x_ref[0], x_ref.shape[1])
    y1 = conv_relu(s1_ref, w1_ref, b1_ref)                 # (Cmid, HW) f32, stays on-chip

    # ---- Stage 2 (fused): stage-1 activation never leaves VMEM ----
    fill_bands(s2_ref, y1.astype(jnp.bfloat16), w1_ref.shape[1])
    y2 = conv_relu(s2_ref, w2_ref, b2_ref)                 # (Cout, HW) f32

    o_ref[0] = y2.astype(o_ref.dtype)                      # lane-dense HBM store (last dim = HW)


def _pack_weights(w_oihw):
    """OIHW (Cout, Cin, 3, 3) -> (3, Cout, 3*Cin) bf16, [kh, co, kw*Cin + ci] = w[co, ci, kh, kw]."""
    cout, cin = w_oihw.shape[0], w_oihw.shape[1]
    return jnp.transpose(w_oihw, (2, 0, 3, 1)).reshape(3, cout, 3 * cin).astype(jnp.bfloat16)


def double_conv_forward(x_nchw, params):
    """Matches PyTorch double_conv.forward: conv3x3 -> ReLU -> conv3x3 -> ReLU (NCHW in/out)."""
    w1, b1, w2, b2 = params                                # OIHW weights + biases, like nn.Conv2d
    N, Cin, H, W = x_nchw.shape
    Cmid, Cout = w1.shape[0], w2.shape[0]
    HW = H * W
    HWQ = HW + 2 * W                                       # dw-stacked slab width (with halos)

    x_flat = x_nchw.reshape(N, Cin, HW).astype(jnp.bfloat16)   # free reshape + cheap cast
    col_idx = jnp.tile(jnp.arange(W, dtype=jnp.int32), H).reshape(1, HW)
    w1_p, w2_p = _pack_weights(w1), _pack_weights(w2)
    b1_c = b1.reshape(Cmid, 1).astype(jnp.float32)
    b2_c = b2.reshape(Cout, 1).astype(jnp.float32)

    kernel = functools.partial(_double_conv_kernel, W=W)
    out_flat = pl.pallas_call(
        kernel,
        out_shape=jax.ShapeDtypeStruct((N, Cout, HW), x_nchw.dtype),
        grid=(N,),
        in_specs=[
            pl.BlockSpec((1, HW), lambda n: (0, 0)),                 # column-index plane (shared)
            pl.BlockSpec((1, Cin, HW), lambda n: (n, 0, 0)),         # input, one batch element
            pl.BlockSpec((3, Cmid, 3 * Cin), lambda n: (0, 0, 0)),   # conv1 weights (kw-stacked)
            pl.BlockSpec((Cmid, 1), lambda n: (0, 0)),               # conv1 bias
            pl.BlockSpec((3, Cout, 3 * Cmid), lambda n: (0, 0, 0)),  # conv2 weights (kw-stacked)
            pl.BlockSpec((Cout, 1), lambda n: (0, 0)),               # conv2 bias
        ],
        out_specs=pl.BlockSpec((1, Cout, HW), lambda n: (n, 0, 0)),
        scratch_shapes=[
            pltpu.VMEM((3 * Cin, HWQ), jnp.bfloat16),                # stage-1 dw-stacked source
            pltpu.VMEM((3 * Cmid, HWQ), jnp.bfloat16),               # stage-2 dw-stacked source
        ],
        compiler_params=pltpu.CompilerParams(dimension_semantics=("parallel",)),
    )(col_idx, x_flat, w1_p, b1_c, w2_p, b2_c)
    return out_flat.reshape(N, Cout, H, W)                 # free reshape back to NCHW


def init_params(key, in_channels, out_channels, dtype=jnp.float32):
    """Deterministic init mimicking nn.Conv2d default (uniform +/- 1/sqrt(fan_in)), OIHW."""
    k1, k2, k3, k4 = jax.random.split(key, 4)
    bnd1 = 1.0 / jnp.sqrt(in_channels * 9)
    bnd2 = 1.0 / jnp.sqrt(out_channels * 9)
    w1 = jax.random.uniform(k1, (out_channels, in_channels, 3, 3), dtype, -bnd1, bnd1)
    b1 = jax.random.uniform(k2, (out_channels,), dtype, -bnd1, bnd1)
    w2 = jax.random.uniform(k3, (out_channels, out_channels, 3, 3), dtype, -bnd2, bnd2)
    b2 = jax.random.uniform(k4, (out_channels,), dtype, -bnd2, bnd2)
    return w1, b1, w2, b2


def _reference_forward(x_nchw, params):
    """Pure-JAX f32 reference (lax conv) for correctness check, NCHW / OIHW like PyTorch."""
    w1, b1, w2, b2 = params

    def conv(x, w, b):
        y = jax.lax.conv_general_dilated(
            x, w, window_strides=(1, 1), padding="SAME",
            dimension_numbers=("NCHW", "OIHW", "NCHW"))
        return jnp.maximum(y + b[None, :, None, None], 0.0)

    return conv(conv(x_nchw, w1, b1), w2, b2)


if __name__ == "__main__":
    key = jax.random.PRNGKey(0)
    kx, kp = jax.random.split(key)

    batch, in_channels, out_channels, spatial = 2, 4, 8, 16
    x = jax.random.normal(kx, (batch, in_channels, spatial, spatial), jnp.float32)
    params = init_params(kp, in_channels, out_channels)

    out = jax.jit(double_conv_forward)(x, params)
    out = jax.block_until_ready(out)

    ref = _reference_forward(x, params)
    assert out.shape == (batch, out_channels, spatial, spatial)
    # bf16 MXU operands with f32 accumulation: tolerance loosened accordingly.
    assert jnp.allclose(out, ref, atol=3e-2, rtol=3e-2), "mismatch vs lax conv reference"

    print("KERNEL_OK")
</pallas_src>

<mosaic_0001>
module attributes {stable_mosaic.version = 11 : i64} {
  func.func @_double_conv_kernel(%arg0: i32, %arg1: memref<1x256xi32, #tpu.memory_space<vmem>>, %arg2: memref<1x4x256xbf16, #tpu.memory_space<vmem>>, %arg3: memref<3x8x12xbf16, #tpu.memory_space<vmem>>, %arg4: memref<8x1xf32, #tpu.memory_space<vmem>>, %arg5: memref<3x8x24xbf16, #tpu.memory_space<vmem>>, %arg6: memref<8x1xf32, #tpu.memory_space<vmem>>, %arg7: memref<1x8x256xf32, #tpu.memory_space<vmem>>, %arg8: memref<12x288xbf16, #tpu.memory_space<vmem>>, %arg9: memref<24x288xbf16, #tpu.memory_space<vmem>>) attributes {dimension_semantics = [#tpu.dimension_semantics<parallel>], iteration_bounds = array<i64: 2>, scalar_prefetch = 0 : i64, scratch_operands = 2 : i64, tpu.core_type = #tpu.core_type<tc>, window_params = [{pipeline_mode = #tpu.pipeline_mode<synchronous>, transform_indices = @transform_0, window_bounds = array<i64: 1, 256>}, {transform_indices = @transform_1, window_bounds = array<i64: 1, 4, 256>}, {pipeline_mode = #tpu.pipeline_mode<synchronous>, transform_indices = @transform_2, window_bounds = array<i64: 3, 8, 12>}, {pipeline_mode = #tpu.pipeline_mode<synchronous>, transform_indices = @transform_3, window_bounds = array<i64: 8, 1>}, {pipeline_mode = #tpu.pipeline_mode<synchronous>, transform_indices = @transform_4, window_bounds = array<i64: 3, 8, 24>}, {pipeline_mode = #tpu.pipeline_mode<synchronous>, transform_indices = @transform_5, window_bounds = array<i64: 8, 1>}, {transform_indices = @transform_6, window_bounds = array<i64: 1, 8, 256>}]} {
    %c0 = arith.constant 0 : index
    %c0_0 = arith.constant 0 : index
    %0 = vector.load %arg1[%c0, %c0_0] : memref<1x256xi32, #tpu.memory_space<vmem>>, vector<1x256xi32>
    %c15_i32 = arith.constant 15 : i32
    %1 = vector.broadcast %c15_i32 : i32 to vector<1x256xi32>
    %2 = arith.cmpi ne, %0, %1 : vector<1x256xi32>
    %3 = arith.extui %2 : vector<1x256xi1> to vector<1x256xi32>
    %4 = arith.sitofp %3 : vector<1x256xi32> to vector<1x256xf32>
    %5 = arith.truncf %4 : vector<1x256xf32> to vector<1x256xbf16>
    %c0_i32 = arith.constant 0 : i32
    %6 = vector.broadcast %c0_i32 : i32 to vector<1x256xi32>
    %7 = arith.cmpi ne, %0, %6 : vector<1x256xi32>
    %8 = arith.extui %7 : vector<1x256xi1> to vector<1x256xi32>
    %9 = arith.sitofp %8 : vector<1x256xi32> to vector<1x256xf32>
    %10 = arith.truncf %9 : vector<1x256xf32> to vector<1x256xbf16>
    %cst = arith.constant 0.000000e+00 : bf16
    %11 = vector.broadcast %cst : bf16 to vector<12x17xbf16>
    %c0_1 = arith.constant 0 : index
    %c0_2 = arith.constant 0 : index
    %12 = vector.load %arg8[%c0_1, %c0_2] : memref<12x288xbf16, #tpu.memory_space<vmem>>, vector<12x17xbf16>
    tpu.vector_store %arg8[%c0_1, %c0_2], %11 {strides = array<i32>} : memref<12x288xbf16, #tpu.memory_space<vmem>>, vector<12x17xbf16>,
    %c0_3 = arith.constant 0 : index
    %c271 = arith.constant 271 : index
    %13 = vector.load %arg8[%c0_3, %c271] : memref<12x288xbf16, #tpu.memory_space<vmem>>, vector<12x17xbf16>
    tpu.vector_store %arg8[%c0_3, %c271], %11 {strides = array<i32>} : memref<12x288xbf16, #tpu.memory_space<vmem>>, vector<12x17xbf16>,
    %cst_4 = arith.constant 0.000000e+00 : bf16
    %14 = vector.broadcast %cst_4 : bf16 to vector<24x17xbf16>
    %c0_5 = arith.constant 0 : index
    %c0_6 = arith.constant 0 : index
    %15 = vector.load %arg9[%c0_5, %c0_6] : memref<24x288xbf16, #tpu.memory_space<vmem>>, vector<24x17xbf16>
    tpu.vector_store %arg9[%c0_5, %c0_6], %14 {strides = array<i32>} : memref<24x288xbf16, #tpu.memory_space<vmem>>, vector<24x17xbf16>,
    %c0_7 = arith.constant 0 : index
    %c271_8 = arith.constant 271 : index
    %16 = vector.load %arg9[%c0_7, %c271_8] : memref<24x288xbf16, #tpu.memory_space<vmem>>, vector<24x17xbf16>
    tpu.vector_store %arg9[%c0_7, %c271_8], %14 {strides = array<i32>} : memref<24x288xbf16, #tpu.memory_space<vmem>>, vector<24x17xbf16>,
    %c0_9 = arith.constant 0 : index
    %c0_10 = arith.constant 0 : index
    %c0_11 = arith.constant 0 : index
    %17 = vector.load %arg2[%c0_9, %c0_10, %c0_11] : memref<1x4x256xbf16, #tpu.memory_space<vmem>>, vector<1x4x256xbf16>
    %18 = vector.shape_cast %17 : vector<1x4x256xbf16> to vector<4x256xbf16>
    %19 = vector.broadcast %5 : vector<1x256xbf16> to vector<4x256xbf16>
    %20 = arith.mulf %18, %19 : vector<4x256xbf16>
    %c0_12 = arith.constant 0 : index
    %c17 = arith.constant 17 : index
    %21 = vector.load %arg8[%c0_12, %c17] : memref<12x288xbf16, #tpu.memory_space<vmem>>, vector<4x256xbf16>
    tpu.vector_store %arg8[%c0_12, %c17], %20 {strides = array<i32>} : memref<12x288xbf16, #tpu.memory_space<vmem>>, vector<4x256xbf16>,
    %c4 = arith.constant 4 : index
    %c16 = arith.constant 16 : index
    %22 = vector.load %arg8[%c4, %c16] : memref<12x288xbf16, #tpu.memory_space<vmem>>, vector<4x256xbf16>
    tpu.vector_store %arg8[%c4, %c16], %18 {strides = array<i32>} : memref<12x288xbf16, #tpu.memory_space<vmem>>, vector<4x256xbf16>,
    %23 = vector.broadcast %10 : vector<1x256xbf16> to vector<4x256xbf16>
    %24 = arith.mulf %18, %23 : vector<4x256xbf16>
    %c8 = arith.constant 8 : index
    %c15 = arith.constant 15 : index
    %25 = vector.load %arg8[%c8, %c15] : memref<12x288xbf16, #tpu.memory_space<vmem>>, vector<4x256xbf16>
    tpu.vector_store %arg8[%c8, %c15], %24 {strides = array<i32>} : memref<12x288xbf16, #tpu.memory_space<vmem>>, vector<4x256xbf16>,
    %cst_13 = arith.constant 0.000000e+00 : f32
    %26 = vector.broadcast %cst_13 : f32 to vector<8x256xf32>
    %c0_14 = arith.constant 0 : index
    %c0_15 = arith.constant 0 : index
    %c0_16 = arith.constant 0 : index
    %27 = vector.load %arg3[%c0_14, %c0_15, %c0_16] : memref<3x8x12xbf16, #tpu.memory_space<vmem>>, vector<1x8x12xbf16>
    %28 = vector.shape_cast %27 : vector<1x8x12xbf16> to vector<8x12xbf16>
    %c0_17 = arith.constant 0 : index
    %c0_18 = arith.constant 0 : index
    %29 = vector.load %arg8[%c0_17, %c0_18] : memref<12x288xbf16, #tpu.memory_space<vmem>>, vector<12x256xbf16>
    %cst_19 = arith.constant dense<0.000000e+00> : vector<8x256xf32>
    %30 = tpu.matmul %28, %29, %cst_19 {dimension_numbers = #tpu.dot_dimension_numbers<[1], [0], [0], [1], [0, 0, 1, 1], [], []>} : vector<8x12xbf16>, vector<12x256xbf16>, vector<8x256xf32> -> vector<8x256xf32>
    %31 = arith.addf %26, %30 : vector<8x256xf32>
    %c1 = arith.constant 1 : index
    %c0_20 = arith.constant 0 : index
    %c0_21 = arith.constant 0 : index
    %32 = vector.load %arg3[%c1, %c0_20, %c0_21] : memref<3x8x12xbf16, #tpu.memory_space<vmem>>, vector<1x8x12xbf16>
    %33 = vector.shape_cast %32 : vector<1x8x12xbf16> to vector<8x12xbf16>
    %c0_22 = arith.constant 0 : index
    %c16_23 = arith.constant 16 : index
    %34 = vector.load %arg8[%c0_22, %c16_23] : memref<12x288xbf16, #tpu.memory_space<vmem>>, vector<12x256xbf16>
    %cst_24 = arith.constant dense<0.000000e+00> : vector<8x256xf32>
    %35 = tpu.matmul %33, %34, %cst_24 {dimension_numbers = #tpu.dot_dimension_numbers<[1], [0], [0], [1], [0, 0, 1, 1], [], []>} : vector<8x12xbf16>, vector<12x256xbf16>, vector<8x256xf32> -> vector<8x256xf32>
    %36 = arith.addf %31, %35 : vector<8x256xf32>
    %c2 = arith.constant 2 : index
    %c0_25 = arith.constant 0 : index
    %c0_26 = arith.constant 0 : index
    %37 = vector.load %arg3[%c2, %c0_25, %c0_26] : memref<3x8x12xbf16, #tpu.memory_space<vmem>>, vector<1x8x12xbf16>
    %38 = vector.shape_cast %37 : vector<1x8x12xbf16> to vector<8x12xbf16>
    %c0_27 = arith.constant 0 : index
    %c32 = arith.constant 32 : index
    %39 = vector.load %arg8[%c0_27, %c32] : memref<12x288xbf16, #tpu.memory_space<vmem>>, vector<12x256xbf16>
    %cst_28 = arith.constant dense<0.000000e+00> : vector<8x256xf32>
    %40 = tpu.matmul %38, %39, %cst_28 {dimension_numbers = #tpu.dot_dimension_numbers<[1], [0], [0], [1], [0, 0, 1, 1], [], []>} : vector<8x12xbf16>, vector<12x256xbf16>, vector<8x256xf32> -> vector<8x256xf32>
    %41 = arith.addf %36, %40 : vector<8x256xf32>
    %c0_29 = arith.constant 0 : index
    %c0_30 = arith.constant 0 : index
    %42 = vector.load %arg4[%c0_29, %c0_30] : memref<8x1xf32, #tpu.memory_space<vmem>>, vector<8x1xf32>
    %43 = vector.broadcast %42 : vector<8x1xf32> to vector<8x256xf32>
    %44 = arith.addf %41, %43 : vector<8x256xf32>
    %cst_31 = arith.constant 0.000000e+00 : f32
    %45 = vector.broadcast %cst_31 : f32 to vector<8x256xf32>
    %46 = arith.maximumf %44, %45 : vector<8x256xf32>
    %47 = arith.truncf %46 : vector<8x256xf32> to vector<8x256xbf16>
    %48 = vector.broadcast %5 : vector<1x256xbf16> to vector<8x256xbf16>
    %49 = arith.mulf %47, %48 : vector<8x256xbf16>
    %c0_32 = arith.constant 0 : index
    %c17_33 = arith.constant 17 : index
    %50 = vector.load %arg9[%c0_32, %c17_33] : memref<24x288xbf16, #tpu.memory_space<vmem>>, vector<8x256xbf16>
    tpu.vector_store %arg9[%c0_32, %c17_33], %49 {strides = array<i32>} : memref<24x288xbf16, #tpu.memory_space<vmem>>, vector<8x256xbf16>,
    %c8_34 = arith.constant 8 : index
    %c16_35 = arith.constant 16 : index
    %51 = vector.load %arg9[%c8_34, %c16_35] : memref<24x288xbf16, #tpu.memory_space<vmem>>, vector<8x256xbf16>
    tpu.vector_store %arg9[%c8_34, %c16_35], %47 {strides = array<i32>} : memref<24x288xbf16, #tpu.memory_space<vmem>>, vector<8x256xbf16>,
    %52 = vector.broadcast %10 : vector<1x256xbf16> to vector<8x256xbf16>
    %53 = arith.mulf %47, %52 : vector<8x256xbf16>
    %c16_36 = arith.constant 16 : index
    %c15_37 = arith.constant 15 : index
    %54 = vector.load %arg9[%c16_36, %c15_37] : memref<24x288xbf16, #tpu.memory_space<vmem>>, vector<8x256xbf16>
    tpu.vector_store %arg9[%c16_36, %c15_37], %53 {strides = array<i32>} : memref<24x288xbf16, #tpu.memory_space<vmem>>, vector<8x256xbf16>,
    %cst_38 = arith.constant 0.000000e+00 : f32
    %55 = vector.broadcast %cst_38 : f32 to vector<8x256xf32>
    %c0_39 = arith.constant 0 : index
    %c0_40 = arith.constant 0 : index
    %c0_41 = arith.constant 0 : index
    %56 = vector.load %arg5[%c0_39, %c0_40, %c0_41] : memref<3x8x24xbf16, #tpu.memory_space<vmem>>, vector<1x8x24xbf16>
    %57 = vector.shape_cast %56 : vector<1x8x24xbf16> to vector<8x24xbf16>
    %c0_42 = arith.constant 0 : index
    %c0_43 = arith.constant 0 : index
    %58 = vector.load %arg9[%c0_42, %c0_43] : memref<24x288xbf16, #tpu.memory_space<vmem>>, vector<24x256xbf16>
    %cst_44 = arith.constant dense<0.000000e+00> : vector<8x256xf32>
    %59 = tpu.matmul %57, %58, %cst_44 {dimension_numbers = #tpu.dot_dimension_numbers<[1], [0], [0], [1], [0, 0, 1, 1], [], []>} : vector<8x24xbf16>, vector<24x256xbf16>, vector<8x256xf32> -> vector<8x256xf32>
    %60 = arith.addf %55, %59 : vector<8x256xf32>
    %c1_45 = arith.constant 1 : index
    %c0_46 = arith.constant 0 : index
    %c0_47 = arith.constant 0 : index
    %61 = vector.load %arg5[%c1_45, %c0_46, %c0_47] : memref<3x8x24xbf16, #tpu.memory_space<vmem>>, vector<1x8x24xbf16>
    %62 = vector.shape_cast %61 : vector<1x8x24xbf16> to vector<8x24xbf16>
    %c0_48 = arith.constant 0 : index
    %c16_49 = arith.constant 16 : index
    %63 = vector.load %arg9[%c0_48, %c16_49] : memref<24x288xbf16, #tpu.memory_space<vmem>>, vector<24x256xbf16>
    %cst_50 = arith.constant dense<0.000000e+00> : vector<8x256xf32>
    %64 = tpu.matmul %62, %63, %cst_50 {dimension_numbers = #tpu.dot_dimension_numbers<[1], [0], [0], [1], [0, 0, 1, 1], [], []>} : vector<8x24xbf16>, vector<24x256xbf16>, vector<8x256xf32> -> vector<8x256xf32>
    %65 = arith.addf %60, %64 : vector<8x256xf32>
    %c2_51 = arith.constant 2 : index
    %c0_52 = arith.constant 0 : index
    %c0_53 = arith.constant 0 : index
    %66 = vector.load %arg5[%c2_51, %c0_52, %c0_53] : memref<3x8x24xbf16, #tpu.memory_space<vmem>>, vector<1x8x24xbf16>
    %67 = vector.shape_cast %66 : vector<1x8x24xbf16> to vector<8x24xbf16>
    %c0_54 = arith.constant 0 : index
    %c32_55 = arith.constant 32 : index
    %68 = vector.load %arg9[%c0_54, %c32_55] : memref<24x288xbf16, #tpu.memory_space<vmem>>, vector<24x256xbf16>
    %cst_56 = arith.constant dense<0.000000e+00> : vector<8x256xf32>
    %69 = tpu.matmul %67, %68, %cst_56 {dimension_numbers = #tpu.dot_dimension_numbers<[1], [0], [0], [1], [0, 0, 1, 1], [], []>} : vector<8x24xbf16>, vector<24x256xbf16>, vector<8x256xf32> -> vector<8x256xf32>
    %70 = arith.addf %65, %69 : vector<8x256xf32>
    %c0_57 = arith.constant 0 : index
    %c0_58 = arith.constant 0 : index
    %71 = vector.load %arg6[%c0_57, %c0_58] : memref<8x1xf32, #tpu.memory_space<vmem>>, vector<8x1xf32>
    %72 = vector.broadcast %71 : vector<8x1xf32> to vector<8x256xf32>
    %73 = arith.addf %70, %72 : vector<8x256xf32>
    %cst_59 = arith.constant 0.000000e+00 : f32
    %74 = vector.broadcast %cst_59 : f32 to vector<8x256xf32>
    %75 = arith.maximumf %73, %74 : vector<8x256xf32>
    %c0_60 = arith.constant 0 : index
    %c0_61 = arith.constant 0 : index
    %c0_62 = arith.constant 0 : index
    %76 = vector.load %arg7[%c0_60, %c0_61, %c0_62] : memref<1x8x256xf32, #tpu.memory_space<vmem>>, vector<1x8x256xf32>
    %77 = vector.shape_cast %76 : vector<1x8x256xf32> to vector<8x256xf32>
    %78 = vector.shape_cast %75 : vector<8x256xf32> to vector<1x8x256xf32>
    tpu.vector_store %arg7[%c0_60, %c0_61, %c0_62], %78 {strides = array<i32>} : memref<1x8x256xf32, #tpu.memory_space<vmem>>, vector<1x8x256xf32>,
    return
  }
  func.func @transform_0(%arg0: i32) -> (i32, i32) {
    %c0_i32 = arith.constant 0 : i32
    %c0_i32_0 = arith.constant 0 : i32
    %c0_i32_1 = arith.constant 0 : i32
    return %c0_i32, %c0_i32_0 : i32, i32
  }
  func.func @transform_1(%arg0: i32) -> (i32, i32, i32) {
    %c0_i32 = arith.constant 0 : i32
    %c0_i32_0 = arith.constant 0 : i32
    %c0_i32_1 = arith.constant 0 : i32
    return %arg0, %c0_i32, %c0_i32_0 : i32, i32, i32
  }
  func.func @transform_2(%arg0: i32) -> (i32, i32, i32) {
    %c0_i32 = arith.constant 0 : i32
    %c0_i32_0 = arith.constant 0 : i32
    %c0_i32_1 = arith.constant 0 : i32
    %c0_i32_2 = arith.constant 0 : i32
    return %c0_i32, %c0_i32_0, %c0_i32_1 : i32, i32, i32
  }
  func.func @transform_3(%arg0: i32) -> (i32, i32) {
    %c0_i32 = arith.constant 0 : i32
    %c0_i32_0 = arith.constant 0 : i32
    %c0_i32_1 = arith.constant 0 : i32
    return %c0_i32, %c0_i32_0 : i32, i32
  }
  func.func @transform_4(%arg0: i32) -> (i32, i32, i32) {
    %c0_i32 = arith.constant 0 : i32
    %c0_i32_0 = arith.constant 0 : i32
    %c0_i32_1 = arith.constant 0 : i32
    %c0_i32_2 = arith.constant 0 : i32
    return %c0_i32, %c0_i32_0, %c0_i32_1 : i32, i32, i32
  }
  func.func @transform_5(%arg0: i32) -> (i32, i32) {
    %c0_i32 = arith.constant 0 : i32
    %c0_i32_0 = arith.constant 0 : i32
    %c0_i32_1 = arith.constant 0 : i32
    return %c0_i32, %c0_i32_0 : i32, i32
  }
  func.func @transform_6(%arg0: i32) -> (i32, i32, i32) {
    %c0_i32 = arith.constant 0 : i32
    %c0_i32_0 = arith.constant 0 : i32
    %c0_i32_1 = arith.constant 0 : i32
    return %arg0, %c0_i32, %c0_i32_0 : i32, i32, i32
  }
}

</mosaic_0001>

<llo_original>
// kernel: tile.9
$region0: #{tile.9}
  %s0 = inlined_call_operand.vmem [shape: s32[16,16], index: 0, kind: input, shape index: {}]
  %s1 = inlined_call_operand.vmem [shape: s32[1,256], index: 1, kind: output, shape index: {}]
  $region1: #{tile.9} parent=0
    #allocation0 [shape = 'u8[8192]{0}', space=vmem, size = 0x2000, scoped, tag = 'scoped mem for output reshape']
    %s2 = smov 3
    %v3 = vld [vmem:[%s0] ss:$8 sm:%s2]
    %vm4 = vcmask 130048
    %5 = vst.msk [vmem:[#allocation0] ss:$8 sm:$0x3] %vm4, %v3
    %s6 = scalar_lea.vmem %s0, 7
    %s7 = smov 3
    %v8 = vld [vmem:[%s6] ss:$8 sm:%s7]
    %9 = vrot.lane.b32.xlu0 %v8, 112
    %v10 = vpop.permute.xlu0 %9
    %vm11 = vcmask 1048448
    %12 = vst.msk [vmem:[#allocation0] ss:$8 sm:$0x3] %vm11, %v10
    %s13 = scalar_lea.vmem %s0, 6
    %s14 = smov 3
    %v15 = vld [vmem:[%s13] ss:$8 sm:%s14]
    %16 = vrot.lane.b32.xlu0 %v15, 96
    %v17 = vpop.permute.xlu0 %16
    %vm18 = vcmask 917248
    %19 = vst.msk [vmem:[#allocation0] ss:$8 sm:$0x3] %vm18, %v17
    %s20 = scalar_lea.vmem %s0, 5
    %s21 = smov 3
    %v22 = vld [vmem:[%s20] ss:$8 sm:%s21]
    %23 = vrot.lane.b32.xlu0 %v22, 80
    %v24 = vpop.permute.xlu0 %23
    %vm25 = vcmask 786048
    %26 = vst.msk [vmem:[#allocation0] ss:$8 sm:$0x3] %vm25, %v24
    %s27 = scalar_lea.vmem %s0, 4
    %s28 = smov 3
    %v29 = vld [vmem:[%s27] ss:$8 sm:%s28]
    %30 = vrot.lane.b32.xlu0 %v29, 64
    %v31 = vpop.permute.xlu0 %30
    %vm32 = vcmask 654848
    %33 = vst.msk [vmem:[#allocation0] ss:$8 sm:$0x3] %vm32, %v31
    %s34 = scalar_lea.vmem %s0, 3
    %s35 = smov 3
    %v36 = vld [vmem:[%s34] ss:$8 sm:%s35]
    %37 = vrot.lane.b32.xlu0 %v36, 48
    %v38 = vpop.permute.xlu0 %37
    %vm39 = vcmask 523648
    %40 = vst.msk [vmem:[#allocation0] ss:$8 sm:$0x3] %vm39, %v38
    %s41 = scalar_lea.vmem %s0, 2
    %s42 = smov 3
    %v43 = vld [vmem:[%s41] ss:$8 sm:%s42]
    %44 = vrot.lane.b32.xlu0 %v43, 32
    %v45 = vpop.permute.xlu0 %44
    %vm46 = vcmask 392448
    %47 = vst.msk [vmem:[#allocation0] ss:$8 sm:$0x3] %vm46, %v45
    %s48 = scalar_lea.vmem %s0, 1
    %s49 = smov 3
    %v50 = vld [vmem:[%s48] ss:$8 sm:%s49]
    %51 = vrot.lane.b32.xlu0 %v50, 16
    %v52 = vpop.permute.xlu0 %51
    %vm53 = vcmask 261248
    %54 = vst.msk [vmem:[#allocation0] ss:$8 sm:$0x3] %vm53, %v52
    %s56 = sshll.u32 1, 1
    %s57 = ssub.s32 %s56, 1
    %v59 = vld [vmem:[#allocation0] sm:%s57]
    %s60 = sshll.u32 1, 1
    %s61 = ssub.s32 %s60, 1
    %62 = vst [vmem:[%s1] sm:%s61] %v59
    %s63 = scalar_lea.vmem [#allocation0], 8
    %v64 = vld [vmem:[%s63] sm:%s57]
    %s65 = sshll.u32 1, 1
    %s66 = ssub.s32 %s65, 1
    %s67 = scalar_lea.vmem %s1, 1
    %68 = vst [vmem:[%s67] sm:%s66] %v64

// kernel: double_conv_forward.1
$region0: #{double_conv_forward.1}
  #allocation0 [shape = 'u32[]', space=smem, size = 0x4, offset = 0x4, fixed_abs, tag = 'smem constant byte address 0x4 - core index']
  #allocation1 [shape = 'u32[144,128]{1,0:T(1,128)}', space=vmem, size = 0x12000, scoped, tag = 'internal scratch']
  #allocation2 [shape = 'bf16[12,288]{1,0:T(8,128)(2,1)}', space=vmem, size = 0x3000, scoped, tag = 'scratch operand']
  #allocation3 [shape = 'bf16[24,288]{1,0:T(8,128)(2,1)}', space=vmem, size = 0x4800, scoped, tag = 'scratch operand']
  %s0 = inlined_call_operand.vmem [shape: s32[1,256], index: 0, kind: input, shape index: {}]
  %s1 = inlined_call_operand.vmem [shape: bf16[2,4,256], index: 1, kind: input, shape index: {}]
  %s2 = inlined_call_operand.vmem [shape: bf16[3,8,12], index: 2, kind: input, shape index: {}]
  %s3 = inlined_call_operand.vmem [shape: f32[8,1], index: 3, kind: input, shape index: {}]
  %s4 = inlined_call_operand.vmem [shape: bf16[3,8,24], index: 4, kind: input, shape index: {}]
  %s5 = inlined_call_operand.vmem [shape: f32[8,1], index: 5, kind: input, shape index: {}]
  %s6 = inlined_call_operand.vmem [shape: f32[2,8,256], index: 6, kind: output, shape index: {}]
  %s7 = sld [smem:[#allocation0]]
  $region57: #{double_conv_forward.1} parent=0
    _
  %s9 = ssub.s32 1, %s7
  %s10 = scalar_select 0, %s9, %s7
  loop: start=0, step=1, limit=4
  $region2: #{double_conv_forward.1} parent=0 // loop_pre_header
    _
  $region3: #{double_conv_forward.1} parent=0 // loop_header
    %s12 = sphi 0, %s16
    %p13 = scmp.ge.s32.totalorder %s12, 4
    %s20 = sphi 0, %s20
    %s22 = sphi 0, %s20
    %s23 = sphi 0, %s22
    %s37 = sphi 0, %s23
    %s43 = sphi 0, %s45
    %s46 = sphi 0, %s43
    %s47 = sphi 0, %s46
    %s63 = sphi 0, %s47
    %s67 = sphi 0, %s67
    %s69 = sphi 0, %s67
    %s70 = sphi 0, %s69
    %s84 = sphi 0, %s70
    %s88 = sphi 0, %s88
    %s90 = sphi 0, %s88
    %s91 = sphi 0, %s90
    %s105 = sphi 0, %s91
    %s109 = sphi 0, %s109
    %s111 = sphi 0, %s109
    %s112 = sphi 0, %s111
    %s126 = sphi 0, %s112
    %s130 = sphi 0, %s130
    %s132 = sphi 0, %s130
    %s133 = sphi 0, %s132
    %s147 = sphi 0, %s133
    %s153 = sphi 0, %s155
    %s156 = sphi 0, %s153
    %s157 = sphi 0, %s156
    %s173 = sphi 0, %s157
  $region4: #{double_conv_forward.1} parent=0 // loop_header_branch
    %15 = sbr.rel (%p13) target = $region8
  $region5: #{double_conv_forward.1} parent=0 // loop_body
    %s17 = ssub.s32 %s12, 1
    %s18 = ssub.s32 %s12, 2
    %s19 = sadd.s32 %s12, 1
    %s21 = sadd.s32 %s20, 1
    %p24 = scmp.eq.s32.totalorder %s12, 1
    %p25 = scmp.ne.s32.totalorder %s20, %s22
    %p26 = scmp.eq.s32.totalorder %s12, 0
    %p27 = por %p25, %p26
    %p28 = scmp.ne.s32.totalorder %s20, %s22
    %p29 = scmp.eq.s32.totalorder %s17, 1
    %p30 = por %p28, %p29
    %p31 = scmp.ne.s32.totalorder %s22, %s23
    %p32 = scmp.eq.s32.totalorder %s17, 0
    %p33 = por %p31, %p32
    %p34 = scmp.ne.s32.totalorder %s22, %s23
    %p35 = scmp.eq.s32.totalorder %s18, 1
    %p36 = por %p34, %p35
    %p38 = scmp.ne.s32.totalorder %s23, %s37
    %p39 = scmp.eq.s32.totalorder %s18, 0
    %p40 = por %p38, %p39
    %s41 = ssub.s32 %s12, %s19
    %p42 = scmp.eq.s32.totalorder %s41, 0
    %s44 = sadd.s32 %s43, 1
    %s45 = scalar_select %p42, %s43, %s44
    %p48 = pneg %p42
    %p49 = scmp.eq.s32.totalorder %s12, 1
    %p50 = por %p48, %p49
    %p51 = scmp.ne.s32.totalorder %s43, %s46
    %p52 = scmp.eq.s32.totalorder %s12, 0
    %p53 = por %p51, %p52
    %p54 = scmp.ne.s32.totalorder %s43, %s46
    %p55 = scmp.eq.s32.totalorder %s17, 1
    %p56 = por %p54, %p55
    %p57 = scmp.ne.s32.totalorder %s46, %s47
    %p58 = scmp.eq.s32.totalorder %s17, 0
    %p59 = por %p57, %p58
    %p60 = scmp.ne.s32.totalorder %s46, %s47
    %p61 = scmp.eq.s32.totalorder %s18, 1
    %p62 = por %p60, %p61
    %p64 = scmp.ne.s32.totalorder %s47, %s63
    %p65 = scmp.eq.s32.totalorder %s18, 0
    %p66 = por %p64, %p65
    %s68 = sadd.s32 %s67, 1
    %p71 = scmp.eq.s32.totalorder %s12, 1
    %p72 = scmp.ne.s32.totalorder %s67, %s69
    %p73 = scmp.eq.s32.totalorder %s12, 0
    %p74 = por %p72, %p73
    %p75 = scmp.ne.s32.totalorder %s67, %s69
    %p76 = scmp.eq.s32.totalorder %s17, 1
    %p77 = por %p75, %p76
    %p78 = scmp.ne.s32.totalorder %s69, %s70
    %p79 = scmp.eq.s32.totalorder %s17, 0
    %p80 = por %p78, %p79
    %p81 = scmp.ne.s32.totalorder %s69, %s70
    %p82 = scmp.eq.s32.totalorder %s18, 1
    %p83 = por %p81, %p82
    %p85 = scmp.ne.s32.totalorder %s70, %s84
    %p86 = scmp.eq.s32.totalorder %s18, 0
    %p87 = por %p85, %p86
    %s89 = sadd.s32 %s88, 1
    %p92 = scmp.eq.s32.totalorder %s12, 1
    %p93 = scmp.ne.s32.totalorder %s88, %s90
    %p94 = scmp.eq.s32.totalorder %s12, 0
    %p95 = por %p93, %p94
    %p96 = scmp.ne.s32.totalorder %s88, %s90
    %p97 = scmp.eq.s32.totalorder %s17, 1
    %p98 = por %p96, %p97
    %p99 = scmp.ne.s32.totalorder %s90, %s91
    %p100 = scmp.eq.s32.totalorder %s17, 0
    %p101 = por %p99, %p100
    %p102 = scmp.ne.s32.totalorder %s90, %s91
    %p103 = scmp.eq.s32.totalorder %s18, 1
    %p104 = por %p102, %p103
    %p106 = scmp.ne.s32.totalorder %s91, %s105
    %p107 = scmp.eq.s32.totalorder %s18, 0
    %p108 = por %p106, %p107
    %s110 = sadd.s32 %s109, 1
    %p113 = scmp.eq.s32.totalorder %s12, 1
    %p114 = scmp.ne.s32.totalorder %s109, %s111
    %p115 = scmp.eq.s32.totalorder %s12, 0
    %p116 = por %p114, %p115
    %p117 = scmp.ne.s32.totalorder %s109, %s111
    %p118 = scmp.eq.s32.totalorder %s17, 1
    %p119 = por %p117, %p118
    %p120 = scmp.ne.s32.totalorder %s111, %s112
    %p121 = scmp.eq.s32.totalorder %s17, 0
    %p122 = por %p120, %p121
    %p123 = scmp.ne.s32.totalorder %s111, %s112
    %p124 = scmp.eq.s32.totalorder %s18, 1
    %p125 = por %p123, %p124
    %p127 = scmp.ne.s32.totalorder %s112, %s126
    %p128 = scmp.eq.s32.totalorder %s18, 0
    %p129 = por %p127, %p128
    %s131 = sadd.s32 %s130, 1
    %p134 = scmp.eq.s32.totalorder %s12, 1
    %p135 = scmp.ne.s32.totalorder %s130, %s132
    %p136 = scmp.eq.s32.totalorder %s12, 0
    %p137 = por %p135, %p136
    %p138 = scmp.ne.s32.totalorder %s130, %s132
    %p139 = scmp.eq.s32.totalorder %s17, 1
    %p140 = por %p138, %p139
    %p141 = scmp.ne.s32.totalorder %s132, %s133
    %p142 = scmp.eq.s32.totalorder %s17, 0
    %p143 = por %p141, %p142
    %p144 = scmp.ne.s32.totalorder %s132, %s133
    %p145 = scmp.eq.s32.totalorder %s18, 1
    %p146 = por %p144, %p145
    %p148 = scmp.ne.s32.totalorder %s133, %s147
    %p149 = scmp.eq.s32.totalorder %s18, 0
    %p150 = por %p148, %p149
    %s151 = ssub.s32 %s12, %s19
    %p152 = scmp.eq.s32.totalorder %s151, 0
    %s154 = sadd.s32 %s153, 1
    %s155 = scalar_select %p152, %s153, %s154
    %p158 = pneg %p152
    %p159 = scmp.eq.s32.totalorder %s12, 1
    %p160 = por %p158, %p159
    %p161 = scmp.ne.s32.totalorder %s153, %s156
    %p162 = scmp.eq.s32.totalorder %s12, 0
    %p163 = por %p161, %p162
    %p164 = scmp.ne.s32.totalorder %s153, %s156
    %p165 = scmp.eq.s32.totalorder %s17, 1
    %p166 = por %p164, %p165
    %p167 = scmp.ne.s32.totalorder %s156, %s157
    %p168 = scmp.eq.s32.totalorder %s17, 0
    %p169 = por %p167, %p168
    %p170 = scmp.ne.s32.totalorder %s156, %s157
    %p171 = scmp.eq.s32.totalorder %s18, 1
    %p172 = por %p170, %p171
    %p174 = scmp.ne.s32.totalorder %s157, %s173
    %p175 = scmp.eq.s32.totalorder %s18, 0
    %p176 = por %p174, %p175
    %p177 = scmp.le.s32.totalorder 1, %s12
    %p178 = scmp.lt.s32.totalorder %s12, 3
    %p179 = pnand %p177, %p178
    %p180 = pneg %p179
    // Predicated region
    $region9: #{double_conv_forward.1} parent=5 // pred_check
      _
    $region10: #{double_conv_forward.1} parent=5 // pred_check_branch
      %182 = sbr.rel (%p179) target = $region12
    $region11: #{double_conv_forward.1} parent=5 // pred_region
      %s183 = ssub.s32 %s12, 1
      // Predicated region
      $region13: #{double_conv_forward.1} parent=11 // pred_check
        %p184 = pneg %p33
      $region14: #{double_conv_forward.1} parent=11 // pred_check_branch
        %186 = sbr.rel (%p184) target = $region16
      $region15: #{double_conv_forward.1} parent=11 // pred_region
        _
      $region16: #{double_conv_forward.1} parent=11 // pred_fallthru
        _
      // Predicated region
      $region17: #{double_conv_forward.1} parent=11 // pred_check
        %p187 = pneg %p80
      $region18: #{double_conv_forward.1} parent=11 // pred_check_branch
        %189 = sbr.rel (%p187) target = $region20
      $region19: #{double_conv_forward.1} parent=11 // pred_region
        _
      $region20: #{double_conv_forward.1} parent=11 // pred_fallthru
        _
      // Predicated region
      $region21: #{double_conv_forward.1} parent=11 // pred_check
        %p190 = pneg %p101
      $region22: #{double_conv_forward.1} parent=11 // pred_check_branch
        %192 = sbr.rel (%p190) target = $region24
      $region23: #{double_conv_forward.1} parent=11 // pred_region
        _
      $region24: #{double_conv_forward.1} parent=11 // pred_fallthru
        _
      // Predicated region
      $region25: #{double_conv_forward.1} parent=11 // pred_check
        %p193 = pneg %p122
      $region26: #{double_conv_forward.1} parent=11 // pred_check_branch
        %195 = sbr.rel (%p193) target = $region28
      $region27: #{double_conv_forward.1} parent=11 // pred_region
        _
      $region28: #{double_conv_forward.1} parent=11 // pred_fallthru
        _
      // Predicated region
      $region29: #{double_conv_forward.1} parent=11 // pred_check
        %p196 = pneg %p143
      $region30: #{double_conv_forward.1} parent=11 // pred_check_branch
        %198 = sbr.rel (%p196) target = $region32
      $region31: #{double_conv_forward.1} parent=11 // pred_region
        _
      $region32: #{double_conv_forward.1} parent=11 // pred_fallthru
        _
    $region12: #{double_conv_forward.1} parent=5 // pred_fallthru
      _
    %p199 = scmp.lt.s32.totalorder %s12, 2
    // Predicated region
    $region33: #{double_conv_forward.1} parent=5 // pred_check
      %p200 = pneg %p199
    $region34: #{double_conv_forward.1} parent=5 // pred_check_branch
      %202 = sbr.rel (%p200) target = $region36
    $region35: #{double_conv_forward.1} parent=5 // pred_region
      // Predicated region
      $region37: #{double_conv_forward.1} parent=35 // pred_check
        %p203 = pneg %p53
      $region38: #{double_conv_forward.1} parent=35 // pred_check_branch
        %205 = sbr.rel (%p203) target = $region40
      $region39: #{double_conv_forward.1} parent=35 // pred_region
        %p206 = scmp.lt.s32.totalorder %s12, 1
        %s207 = scalar_select %p206, %s12, 1
        %s208 = smul.addr %s207, 2
        %s209 = smul.addr %s208, 2
        %s210 = scalar_lea.vmem %s1, %s209
      $region40: #{double_conv_forward.1} parent=35 // pred_fallthru
        _
    $region36: #{double_conv_forward.1} parent=5 // pred_fallthru
      _
    %p211 = scmp.le.s32.totalorder 1, %s12
    %p212 = scmp.lt.s32.totalorder %s12, 3
    %p213 = pnand %p211, %p212
    %p214 = pneg %p213
    // Predicated region
    $region41: #{double_conv_forward.1} parent=5 // pred_check
      _
    $region42: #{double_conv_forward.1} parent=5 // pred_check_branch
      %216 = sbr.rel (%p213) target = $region44
    $region43: #{double_conv_forward.1} parent=5 // pred_region
      %s217 = ssub.s32 %s12, 1
      %p218 = pneg %p33
      %p219 = pneg %p30
      %p220 = scmp.lt.s32.totalorder %s17, 1
      %s221 = scalar_select %p220, %s17, 1
      %s222 = smul.addr %s221, 2
      %s223 = smul.addr %s222, 2
      %s224 = scalar_lea.vmem %s1, %s223
      %p225 = pneg %p59
      %p226 = pneg %p56
      %p227 = pneg %p80
      %p228 = pneg %p77
      %p229 = pneg %p101
      %p230 = pneg %p98
      %p231 = pneg %p122
      %p232 = pneg %p119
      %p233 = pneg %p143
      %p234 = pneg %p140
      %p235 = pneg %p169
      %p236 = pneg %p166
      %p237 = scmp.lt.s32.totalorder %s17, 1
      %s238 = scalar_select %p237, %s17, 1
      %s239 = smul.addr %s238, 2
      %s240 = smul.addr %s239, 8
      %s241 = scalar_lea.vmem %s6, %s240
      %p242 = scmp.lt.s32.totalorder %s17, 1
      %s243 = scalar_select %p242, %s17, 1
      %s244 = smul.addr %s243, 2
      %s245 = smul.addr %s244, 2
      %s246 = scalar_lea.vmem %s1, %s245
      %p247 = scmp.lt.s32.totalorder %s17, 1
      %s248 = scalar_select %p247, %s17, 1
      %s249 = smul.addr %s248, 2
      %s250 = smul.addr %s249, 8
      %s251 = scalar_lea.vmem %s6, %s250
      %v253 = vld [vmem:[%s0] sm:$0x3]
      %vm254 = vcmp.ne.s32.totalorder %v253, 15
      %v255 = vsel %vm254, 1, 0
      %v256 = vcvt.s32.f32 %v255
      %v258 = vlaneseq
      %v259 = vshrl.u32 %v258, 7
      %v260 = vsub.s32 0, %v259
      %v261 = vrot.slane %v256, %v260
      %v262 = vlaneseq
      %v263 = vshrl.u32 %v262, 7
      %v264 = vsub.s32 1, %v263
      %v265 = vrot.slane %v256, %v264
      %v268 = vpack.c.bf16 %v261, %v261
      %v269 = vpack.c.bf16 %v265, %v265
      %vm270 = vcmp.ne.s32.totalorder %v253, 0
      %v271 = vsel %vm270, 1, 0
      %v272 = vcvt.s32.f32 %v271
      %v274 = vlaneseq
      %v275 = vshrl.u32 %v274, 7
      %v276 = vsub.s32 0, %v275
      %v277 = vrot.slane %v272, %v276
      %v278 = vlaneseq
      %v279 = vshrl.u32 %v278, 7
      %v280 = vsub.s32 1, %v279
      %v281 = vrot.slane %v272, %v280
      %v284 = vpack.c.bf16 %v277, %v277
      %v285 = vpack.c.bf16 %v281, %v281
      %vm286 = vcmask 134144
      %287 = vst.msk [vmem:[#allocation2] sm:$0xf] %vm286, 0
      %vm288 = vcmask 132096
      %289 = vst.msk [vmem:[#allocation2 + $0xc] sm:$0x3] %vm288, 0
      %vm290 = vcmask 257144
      %291 = vst.msk [vmem:[#allocation2 + $0x8] sm:$0xf] %vm290, 0
      %vm292 = vcmask 255096
      %293 = vst.msk [vmem:[#allocation2 + $0x14] sm:$0x3] %vm292, 0
      %294 = vst.msk [vmem:[#allocation3] sm:$0xf] %vm286, 0
      %295 = vst.msk [vmem:[#allocation3 + $0xc] sm:$0xf] %vm286, 0
      %296 = vst.msk [vmem:[#allocation3 + $0x18] sm:$0xf] %vm286, 0
      %297 = vst.msk [vmem:[#allocation3 + $0x8] sm:$0xf] %vm290, 0
      %298 = vst.msk [vmem:[#allocation3 + $0x14] sm:$0xf] %vm290, 0
      %299 = vst.msk [vmem:[#allocation3 + $0x20] sm:$0xf] %vm290, 0
      %v300 = vld [vmem:[%s246] sm:$0xf]
      %v302 = vpack.i.b16 %v268, %v268
      %v304 = vlaneseq
      %v305 = vshrl.u32 %v304, 7
      %v306 = vsub.s32 0, %v305
      %v307 = vrot.slane %v302, %v306
      %v309 = vpack.i.b16 %v269, %v269
      %v311 = vlaneseq
      %v312 = vshrl.u32 %v311, 7
      %v313 = vsub.s32 0, %v312
      %v314 = vrot.slane %v309, %v313
      %v317 = vcombine.low %v307, %v314
      %v319 = vunpack.c.l.s4 1983009808
      %v320 = vunpack.c.0.s8 %v319
      %v321 = vlaneseq
      %v322 = vshrl.u32 %v321, 7
      %v323 = vsub.s32 %v320, %v322
      %v324 = vrot.slane %v317, %v323
      %v326 = vmul.bf16 %v300, %v324
      %v329 = vunpack.c.l.s4 1983009808
      %v330 = vunpack.c.0.s8 %v329
      %v331 = vlaneseq
      %v332 = vshrl.u32 %v331, 7
      %v333 = vsub.s32 %v330, %v332
      %v334 = vrot.slane %v326, %v333
      %335 = vrot.lane.b32.xlu0 %v334, 17
      %v336 = vpop.permute.xlu0 %335
      %v337 = vrot.slane %v336, 4
      %vm338 = vcmask 138240
      %v339 = vsel %vm338, %v337, %v336
      %vm342 = vcmask 1041544
      %vm343 = vcmask 1045508
      %vm344 = vmor %vm343, %vm342
      %345 = vst.msk [vmem:[#allocation2] sm:$0x33] %vm344, %v339
      %346 = vst.msk [vmem:[#allocation2 + $0x8] sm:$0x3] %vm288, %v337
      %v348 = vcombine.low %v300, %v300
      %v350 = vunpack.c.l.s4 1983009808
      %v351 = vunpack.c.0.s8 %v350
      %v352 = vlaneseq
      %v353 = vshrl.u32 %v352, 7
      %v354 = vsub.s32 %v351, %v353
      %v355 = vrot.slane %v348, %v354
      %356 = vrot.lane.b32.xlu0 %v355, 16
      %v357 = vpop.permute.xlu0 %356
      %v358 = vrot.slane %v357, 4
      %vm359 = vcmask 130048
      %v360 = vsel %vm359, %v358, %v357
      %vm363 = vcmask 1043586
      %vm364 = vcmask 1047558
      %vm365 = vmor %vm364, %vm363
      %366 = vst.msk [vmem:[#allocation2] sm:$0xcc] %vm365, %v360
      %vm367 = vcmask 125954
      %368 = vst.msk [vmem:[#allocation2 + $0x8] sm:$0xc] %vm367, %v358
      %v370 = vpack.i.b16 %v284, %v284
      %v372 = vlaneseq
      %v373 = vshrl.u32 %v372, 7
      %v374 = vsub.s32 0, %v373
      %v375 = vrot.slane %v370, %v374
      %v377 = vpack.i.b16 %v285, %v285
      %v379 = vlaneseq
      %v380 = vshrl.u32 %v379, 7
      %v381 = vsub.s32 0, %v380
      %v382 = vrot.slane %v377, %v381
      %v385 = vcombine.low %v375, %v382
      %v387 = vunpack.c.l.s4 1983009808
      %v388 = vunpack.c.0.s8 %v387
      %v389 = vlaneseq
      %v390 = vshrl.u32 %v389, 7
      %v391 = vsub.s32 %v388, %v390
      %v392 = vrot.slane %v385, %v391
      %v394 = vmul.bf16 %v300, %v392
      %v397 = vunpack.c.l.s4 1983009808
      %v398 = vunpack.c.0.s8 %v397
      %v399 = vlaneseq
      %v400 = vshrl.u32 %v399, 7
      %v401 = vsub.s32 %v398, %v400
      %v402 = vrot.slane %v394, %v401
      %403 = vrot.lane.b32.xlu0 %v402, 15
      %v404 = vpop.permute.xlu0 %403
      %v405 = vrot.slane %v404, 4
      %vm406 = vcmask 121856
      %v407 = vsel %vm406, %v405, %v404
      %vm410 = vcmask 1041528
      %vm411 = vmor %vm343, %vm410
      %412 = vst.msk [vmem:[#allocation2 + $0xc] sm:$0x33] %vm411, %v407
      %vm413 = vcmask 115712
      %414 = vst.msk [vmem:[#allocation2 + $0x14] sm:$0x3] %vm413, %v405
      %v415 = vld [vmem:[%s2] sm:$0xf]
      %v416 = vld [vmem:[#allocation2] sm:$0xff]
      %v417 = vld [vmem:[#allocation2 + $0xc] sm:$0x33]
      %s418 = scalar_lea.vmem %s2, 4
      %v419 = vld [vmem:[%s418] sm:$0xf]
      %v420 = vld [vmem:[#allocation2 + $0x8] sm:$0xf]
      %v421 = vld [vmem:[#allocation2 + $0x14] sm:$0x3]
      %v426 = vunpack.c.l.b16 %v416
      %v427 = vunpack.c.h.b16 %v416
      %v428 = vunpack.c.l.b16 %v420
      %v429 = vunpack.c.l.b16 %v417
      %v430 = vunpack.c.h.b16 %v417
      %v431 = vunpack.c.l.b16 %v421
      %v432 = vpack.c.b16 %v429, %v426
      %v433 = vpack.c.b16 %v430, %v427
      %v434 = vpack.c.b16 %v431, %v428
      %435 = vrot.lane.b32.xlu0 %v432, 112
      %v436 = vpop.permute.xlu0 %435
      %437 = vrot.lane.b32.xlu0 %v433, 112
      %v438 = vpop.permute.xlu0 %437
      %439 = vrot.lane.b32.xlu0 %v434, 112
      %v440 = vpop.permute.xlu0 %439
      %vm441 = vcmask 916480
      %v442 = vsel %vm441, %v436, %v438
      %v443 = vsel %vm441, %v438, %v440
      %vm444 = vcmask 97280
      %v446 = vsel %vm444, %v419, 0
      %vm448 = vcmask 1045504
      %v450 = vsel %vm448, %v442, 0
      %v453 = vsel %vm448, %v443, 0
      %455 = vmatprep.subr.bf16.mxu0 0
      %456 = vmatpush1.bf16.msra.mxu0 0
      %457 = vmatprep.subr.bf16.mxu0 0
      %458 = vmatpush1.bf16.msra.mxu0 0
      %459 = vmatprep.subr.bf16.mxu0 0
      %460 = vmatpush1.bf16.msra.mxu0 0
      %461 = vmatprep.subr.bf16.mxu0 0
      %462 = vmatpush1.bf16.msra.mxu0 0
      %463 = vmatprep.subr.bf16.mxu0 0
      %464 = vmatpush1.bf16.msra.mxu0 0
      %465 = vmatprep.subr.bf16.mxu0 0
      %466 = vmatpush1.bf16.msra.mxu0 0
      %467 = vmatprep.subr.bf16.mxu0 0
      %468 = vmatpush1.bf16.msra.mxu0 0
      %469 = vmatprep.subr.bf16.mxu0 %v453
      %470 = vmatpush1.bf16.msra.mxu0 %v450
      %471 = vmatprep.subr.bf16.mxu0 0
      %472 = vmatpush2.bf16.msra.mxu0 0
      %473 = vmatprep.subr.bf16.mxu0 0
      %474 = vmatpush2.bf16.msra.mxu0 0
      %475 = vmatprep.subr.bf16.mxu0 0
      %476 = vmatpush2.bf16.msra.mxu0 0
      %477 = vmatprep.subr.bf16.mxu0 0
      %478 = vmatpush2.bf16.msra.mxu0 0
      %479 = vmatprep.subr.bf16.mxu0 0
      %480 = vmatpush2.bf16.msra.mxu0 0
      %481 = vmatprep.subr.bf16.mxu0 0
      %482 = vmatpush2.bf16.msra.mxu0 0
      %483 = vmatprep.subr.bf16.mxu0 0
      %484 = vmatpush2.bf16.msra.mxu0 0
      %485 = vmatprep.subr.bf16.mxu0 0
      %486 = vmatpush2.bf16.msra.mxu0 0
      %487 = vmatprep.mubr.bf16.mxu0 0
      %488 = vmatmul.mubr.bf16.gmra.mxu0 %v446
      %v489 = vpop.f32.mrf.mxu0
      %v490 = vadd.f32 0.0, %v489
      %v491 = vpop.f32.mrf.mxu0
      %v492 = vadd.f32 0.0, %v491
      %v493 = vpop.f32.mrf.mxu0
      %v494 = vpop.f32.mrf.mxu0
      %495 = vdwg.mxu0
      %v497 = vsel %vm444, %v415, 0
      %v500 = vsel %vm448, %v432, 0
      %v503 = vsel %vm448, %v433, 0
      %505 = vmatprep.subr.bf16.mxu0 0
      %506 = vmatpush1.bf16.msra.mxu0 0
      %507 = vmatprep.subr.bf16.mxu0 0
      %508 = vmatpush1.bf16.msra.mxu0 0
      %509 = vmatprep.subr.bf16.mxu0 0
      %510 = vmatpush1.bf16.msra.mxu0 0
      %511 = vmatprep.subr.bf16.mxu0 0
      %512 = vmatpush1.bf16.msra.mxu0 0
      %513 = vmatprep.subr.bf16.mxu0 0
      %514 = vmatpush1.bf16.msra.mxu0 0
      %515 = vmatprep.subr.bf16.mxu0 0
      %516 = vmatpush1.bf16.msra.mxu0 0
      %517 = vmatprep.subr.bf16.mxu0 0
      %518 = vmatpush1.bf16.msra.mxu0 0
      %519 = vmatprep.subr.bf16.mxu0 %v503
      %520 = vmatpush1.bf16.msra.mxu0 %v500
      %521 = vmatprep.subr.bf16.mxu0 0
      %522 = vmatpush2.bf16.msra.mxu0 0
      %523 = vmatprep.subr.bf16.mxu0 0
      %524 = vmatpush2.bf16.msra.mxu0 0
      %525 = vmatprep.subr.bf16.mxu0 0
      %526 = vmatpush2.bf16.msra.mxu0 0
      %527 = vmatprep.subr.bf16.mxu0 0
      %528 = vmatpush2.bf16.msra.mxu0 0
      %529 = vmatprep.subr.bf16.mxu0 0
      %530 = vmatpush2.bf16.msra.mxu0 0
      %531 = vmatprep.subr.bf16.mxu0 0
      %532 = vmatpush2.bf16.msra.mxu0 0
      %533 = vmatprep.subr.bf16.mxu0 0
      %534 = vmatpush2.bf16.msra.mxu0 0
      %535 = vmatprep.subr.bf16.mxu0 0
      %536 = vmatpush2.bf16.msra.mxu0 0
      %537 = vmatprep.mubr.bf16.mxu0 0
      %538 = vmatmul.mubr.bf16.gmra.mxu0 %v497
      %v539 = vpop.f32.mrf.mxu0
      %v540 = vadd.f32 %v490, %v539
      %v541 = vpop.f32.mrf.mxu0
      %v542 = vadd.f32 %v492, %v541
      %v543 = vpop.f32.mrf.mxu0
      %v544 = vpop.f32.mrf.mxu0
      %545 = vdwg.mxu0
      %s546 = scalar_lea.vmem %s2, 8
      %v547 = vld [vmem:[%s546] sm:$0xf]
      %548 = vrot.lane.b32.xlu0 %v432, 96
      %v549 = vpop.permute.xlu0 %548
      %550 = vrot.lane.b32.xlu0 %v433, 96
      %v551 = vpop.permute.xlu0 %550
      %552 = vrot.lane.b32.xlu0 %v434, 96
      %v553 = vpop.permute.xlu0 %552
      %vm554 = vcmask 785408
      %v555 = vsel %vm554, %v549, %v551
      %v556 = vsel %vm554, %v551, %v553
      %v558 = vsel %vm444, %v547, 0
      %v561 = vsel %vm448, %v555, 0
      %v564 = vsel %vm448, %v556, 0
      %566 = vmatprep.subr.bf16.mxu0 0
      %567 = vmatpush1.bf16.msra.mxu0 0
      %568 = vmatprep.subr.bf16.mxu0 0
      %569 = vmatpush1.bf16.msra.mxu0 0
      %570 = vmatprep.subr.bf16.mxu0 0
      %571 = vmatpush1.bf16.msra.mxu0 0
      %572 = vmatprep.subr.bf16.mxu0 0
      %573 = vmatpush1.bf16.msra.mxu0 0
      %574 = vmatprep.subr.bf16.mxu0 0
      %575 = vmatpush1.bf16.msra.mxu0 0
      %576 = vmatprep.subr.bf16.mxu0 0
      %577 = vmatpush1.bf16.msra.mxu0 0
      %578 = vmatprep.subr.bf16.mxu0 0
      %579 = vmatpush1.bf16.msra.mxu0 0
      %580 = vmatprep.subr.bf16.mxu0 %v564
      %581 = vmatpush1.bf16.msra.mxu0 %v561
      %582 = vmatprep.subr.bf16.mxu0 0
      %583 = vmatpush2.bf16.msra.mxu0 0
      %584 = vmatprep.subr.bf16.mxu0 0
      %585 = vmatpush2.bf16.msra.mxu0 0
      %586 = vmatprep.subr.bf16.mxu0 0
      %587 = vmatpush2.bf16.msra.mxu0 0
      %588 = vmatprep.subr.bf16.mxu0 0
      %589 = vmatpush2.bf16.msra.mxu0 0
      %590 = vmatprep.subr.bf16.mxu0 0
      %591 = vmatpush2.bf16.msra.mxu0 0
      %592 = vmatprep.subr.bf16.mxu0 0
      %593 = vmatpush2.bf16.msra.mxu0 0
      %594 = vmatprep.subr.bf16.mxu0 0
      %595 = vmatpush2.bf16.msra.mxu0 0
      %596 = vmatprep.subr.bf16.mxu0 0
      %597 = vmatpush2.bf16.msra.mxu0 0
      %598 = vmatprep.mubr.bf16.mxu0 0
      %599 = vmatmul.mubr.bf16.gmra.mxu0 %v558
      %v600 = vpop.f32.mrf.mxu0
      %v601 = vadd.f32 0.0, %v600
      %v602 = vpop.f32.mrf.mxu0
      %v603 = vadd.f32 0.0, %v602
      %v604 = vpop.f32.mrf.mxu0
      %v605 = vpop.f32.mrf.mxu0
      %606 = vdwg.mxu0
      %v607 = vadd.f32 %v540, %v601
      %v608 = vadd.f32 %v542, %v603
      %v609 = vld [vmem:[%s3] sm:$0xff]
      %611 = vset.pattern.permute.xlu0 0
      %612 = vperm.xlu0 %611, %v609
      %v613 = vpop.permute.xlu0 %612
      %v615 = vadd.f32 %v607, %v613
      %v616 = vadd.f32 %v608, %v613
      %v617 = vmax.f32 %v615, 0.0
      %v618 = vmax.f32 %v616, 0.0
      %v619 = vpack.c.bf16 %v617, %v617
      %v620 = vpack.c.bf16 %v618, %v618
      %v621 = vmul.bf16 %v619, %v307
      %v622 = vmul.bf16 %v620, %v314
      %v625 = vunpack.c.l.b16 %v621
      %v626 = vunpack.c.l.b16 %v622
      %v627 = vpack.c.b16 %v626, %v625
      %628 = vrot.lane.b32.xlu0 %v627, 17
      %v629 = vpop.permute.xlu0 %628
      %v630 = vrot.slane %v629, 4
      %v631 = vsel %vm338, %v630, %v629
      %vm634 = vcmask 1043592
      %vm635 = vcmask 1047556
      %vm636 = vmor %vm635, %vm634
      %637 = vst.msk [vmem:[#allocation3] sm:$0xff] %vm636, %v631
      %638 = vst.msk [vmem:[#allocation3 + $0x8] sm:$0xf] %vm286, %v630
      %v641 = vunpack.c.l.b16 %v619
      %v642 = vunpack.c.l.b16 %v620
      %v643 = vpack.c.b16 %v642, %v641
      %644 = vrot.lane.b32.xlu0 %v643, 16
      %v645 = vpop.permute.xlu0 %644
      %v646 = vrot.slane %v645, 4
      %v647 = vsel %vm359, %v646, %v645
      %vm650 = vcmask 1043584
      %vm651 = vmor %vm635, %vm650
      %652 = vst.msk [vmem:[#allocation3 + $0xc] sm:$0xff] %vm651, %v647
      %vm653 = vcmask 125952
      %654 = vst.msk [vmem:[#allocation3 + $0x14] sm:$0xf] %vm653, %v646
      %v655 = vmul.bf16 %v619, %v375
      %v656 = vmul.bf16 %v620, %v382
      %v659 = vunpack.c.l.b16 %v655
      %v660 = vunpack.c.l.b16 %v656
      %v661 = vpack.c.b16 %v660, %v659
      %662 = vrot.lane.b32.xlu0 %v661, 15
      %v663 = vpop.permute.xlu0 %662
      %v664 = vrot.slane %v663, 4
      %v665 = vsel %vm406, %v664, %v663
      %vm668 = vcmask 1043576
      %vm669 = vmor %vm635, %vm668
      %670 = vst.msk [vmem:[#allocation3 + $0x18] sm:$0xff] %vm669, %v665
      %vm671 = vcmask 117760
      %672 = vst.msk [vmem:[#allocation3 + $0x20] sm:$0xf] %vm671, %v664
      %v673 = vld [vmem:[%s4] sm:$0xf]
      %v674 = vld [vmem:[#allocation3] sm:$0xff]
      %v675 = vld [vmem:[#allocation3 + $0xc] sm:$0xff]
      %v676 = vld [vmem:[#allocation3 + $0x18] sm:$0xff]
      %s677 = scalar_lea.vmem %s4, 4
      %v678 = vld [vmem:[%s677] sm:$0xf]
      %v679 = vld [vmem:[#allocation3 + $0x8] sm:$0xf]
      %v680 = vld [vmem:[#allocation3 + $0x14] sm:$0xf]
      %v681 = vld [vmem:[#allocation3 + $0x20] sm:$0xf]
      %v688 = vunpack.c.l.b16 %v674
      %v689 = vunpack.c.h.b16 %v674
      %v690 = vunpack.c.l.b16 %v679
      %v691 = vunpack.c.l.b16 %v675
      %v692 = vunpack.c.h.b16 %v675
      %v693 = vunpack.c.l.b16 %v680
      %v694 = vunpack.c.l.b16 %v676
      %v695 = vunpack.c.h.b16 %v676
      %v696 = vunpack.c.l.b16 %v681
      %v697 = vpack.c.b16 %v691, %v688
      %v698 = vpack.c.b16 %v692, %v689
      %v699 = vpack.c.b16 %v693, %v690
      %v700 = vpack.c.b16 %v694, %v694
      %v701 = vpack.c.b16 %v695, %v695
      %v702 = vpack.c.b16 %v696, %v696
      %703 = vrot.lane.b32.xlu0 %v697, 112
      %v704 = vpop.permute.xlu0 %703
      %705 = vrot.lane.b32.xlu0 %v698, 112
      %v706 = vpop.permute.xlu0 %705
      %707 = vrot.lane.b32.xlu0 %v699, 112
      %v708 = vpop.permute.xlu0 %707
      %709 = vrot.lane.b32.xlu0 %v700, 112
      %v710 = vpop.permute.xlu0 %709
      %711 = vrot.lane.b32.xlu0 %v701, 112
      %v712 = vpop.permute.xlu0 %711
      %713 = vrot.lane.b32.xlu0 %v702, 112
      %v714 = vpop.permute.xlu0 %713
      %v715 = vsel %vm441, %v704, %v706
      %v716 = vsel %vm441, %v706, %v708
      %v717 = vsel %vm441, %v710, %v712
      %v718 = vsel %vm441, %v712, %v714
      %vm721 = vcmask 195584
      %v723 = vsel %vm721, %v678, 0
      %vm725 = vcmask 1043456
      %v727 = vsel %vm725, %v717, 0
      %v730 = vsel %vm725, %v718, 0
      %732 = vmatprep.subr.bf16.mxu0 0
      %733 = vmatpush1.bf16.msra.mxu0 0
      %734 = vmatprep.subr.bf16.mxu0 0
      %735 = vmatpush1.bf16.msra.mxu0 0
      %736 = vmatprep.subr.bf16.mxu0 0
      %737 = vmatpush1.bf16.msra.mxu0 0
      %738 = vmatprep.subr.bf16.mxu0 0
      %739 = vmatpush1.bf16.msra.mxu0 0
      %740 = vmatprep.subr.bf16.mxu0 0
      %741 = vmatpush1.bf16.msra.mxu0 0
      %742 = vmatprep.subr.bf16.mxu0 0
      %743 = vmatpush1.bf16.msra.mxu0 0
      %744 = vmatprep.subr.bf16.mxu0 %v730
      %745 = vmatpush1.bf16.msra.mxu0 %v727
      %746 = vmatprep.subr.bf16.mxu0 %v716
      %747 = vmatpush1.bf16.msra.mxu0 %v715
      %748 = vmatprep.subr.bf16.mxu0 0
      %749 = vmatpush2.bf16.msra.mxu0 0
      %750 = vmatprep.subr.bf16.mxu0 0
      %751 = vmatpush2.bf16.msra.mxu0 0
      %752 = vmatprep.subr.bf16.mxu0 0
      %753 = vmatpush2.bf16.msra.mxu0 0
      %754 = vmatprep.subr.bf16.mxu0 0
      %755 = vmatpush2.bf16.msra.mxu0 0
      %756 = vmatprep.subr.bf16.mxu0 0
      %757 = vmatpush2.bf16.msra.mxu0 0
      %758 = vmatprep.subr.bf16.mxu0 0
      %759 = vmatpush2.bf16.msra.mxu0 0
      %760 = vmatprep.subr.bf16.mxu0 0
      %761 = vmatpush2.bf16.msra.mxu0 0
      %762 = vmatprep.subr.bf16.mxu0 0
      %763 = vmatpush2.bf16.msra.mxu0 0
      %764 = vmatprep.mubr.bf16.mxu0 0
      %765 = vmatmul.mubr.bf16.gmra.mxu0 %v723
      %v766 = vpop.f32.mrf.mxu0
      %v767 = vadd.f32 0.0, %v766
      %v768 = vpop.f32.mrf.mxu0
      %v769 = vadd.f32 0.0, %v768
      %v770 = vpop.f32.mrf.mxu0
      %v771 = vpop.f32.mrf.mxu0
      %772 = vdwg.mxu0
      %v776 = vsel %vm721, %v673, 0
      %v779 = vsel %vm725, %v700, 0
      %v782 = vsel %vm725, %v701, 0
      %784 = vmatprep.subr.bf16.mxu0 0
      %785 = vmatpush1.bf16.msra.mxu0 0
      %786 = vmatprep.subr.bf16.mxu0 0
      %787 = vmatpush1.bf16.msra.mxu0 0
      %788 = vmatprep.subr.bf16.mxu0 0
      %789 = vmatpush1.bf16.msra.mxu0 0
      %790 = vmatprep.subr.bf16.mxu0 0
      %791 = vmatpush1.bf16.msra.mxu0 0
      %792 = vmatprep.subr.bf16.mxu0 0
      %793 = vmatpush1.bf16.msra.mxu0 0
      %794 = vmatprep.subr.bf16.mxu0 0
      %795 = vmatpush1.bf16.msra.mxu0 0
      %796 = vmatprep.subr.bf16.mxu0 %v782
      %797 = vmatpush1.bf16.msra.mxu0 %v779
      %798 = vmatprep.subr.bf16.mxu0 %v698
      %799 = vmatpush1.bf16.msra.mxu0 %v697
      %800 = vmatprep.subr.bf16.mxu0 0
      %801 = vmatpush2.bf16.msra.mxu0 0
      %802 = vmatprep.subr.bf16.mxu0 0
      %803 = vmatpush2.bf16.msra.mxu0 0
      %804 = vmatprep.subr.bf16.mxu0 0
      %805 = vmatpush2.bf16.msra.mxu0 0
      %806 = vmatprep.subr.bf16.mxu0 0
      %807 = vmatpush2.bf16.msra.mxu0 0
      %808 = vmatprep.subr.bf16.mxu0 0
      %809 = vmatpush2.bf16.msra.mxu0 0
      %810 = vmatprep.subr.bf16.mxu0 0
      %811 = vmatpush2.bf16.msra.mxu0 0
      %812 = vmatprep.subr.bf16.mxu0 0
      %813 = vmatpush2.bf16.msra.mxu0 0
      %814 = vmatprep.subr.bf16.mxu0 0
      %815 = vmatpush2.bf16.msra.mxu0 0
      %816 = vmatprep.mubr.bf16.mxu0 0
      %817 = vmatmul.mubr.bf16.gmra.mxu0 %v776
      %v818 = vpop.f32.mrf.mxu0
      %v819 = vadd.f32 %v767, %v818
      %v820 = vpop.f32.mrf.mxu0
      %v821 = vadd.f32 %v769, %v820
      %v822 = vpop.f32.mrf.mxu0
      %v823 = vpop.f32.mrf.mxu0
      %824 = vdwg.mxu0
      %s825 = scalar_lea.vmem %s4, 8
      %v826 = vld [vmem:[%s825] sm:$0xf]
      %827 = vrot.lane.b32.xlu0 %v697, 96
      %v828 = vpop.permute.xlu0 %827
      %829 = vrot.lane.b32.xlu0 %v698, 96
      %v830 = vpop.permute.xlu0 %829
      %831 = vrot.lane.b32.xlu0 %v699, 96
      %v832 = vpop.permute.xlu0 %831
      %833 = vrot.lane.b32.xlu0 %v700, 96
      %v834 = vpop.permute.xlu0 %833
      %835 = vrot.lane.b32.xlu0 %v701, 96
      %v836 = vpop.permute.xlu0 %835
      %837 = vrot.lane.b32.xlu0 %v702, 96
      %v838 = vpop.permute.xlu0 %837
      %v839 = vsel %vm554, %v828, %v830
      %v840 = vsel %vm554, %v830, %v832
      %v841 = vsel %vm554, %v834, %v836
      %v842 = vsel %vm554, %v836, %v838
      %v846 = vsel %vm721, %v826, 0
      %v849 = vsel %vm725, %v841, 0
      %v852 = vsel %vm725, %v842, 0
      %854 = vmatprep.subr.bf16.mxu0 0
      %855 = vmatpush1.bf16.msra.mxu0 0
      %856 = vmatprep.subr.bf16.mxu0 0
      %857 = vmatpush1.bf16.msra.mxu0 0
      %858 = vmatprep.subr.bf16.mxu0 0
      %859 = vmatpush1.bf16.msra.mxu0 0
      %860 = vmatprep.subr.bf16.mxu0 0
      %861 = vmatpush1.bf16.msra.mxu0 0
      %862 = vmatprep.subr.bf16.mxu0 0
      %863 = vmatpush1.bf16.msra.mxu0 0
      %864 = vmatprep.subr.bf16.mxu0 0
      %865 = vmatpush1.bf16.msra.mxu0 0
      %866 = vmatprep.subr.bf16.mxu0 %v852
      %867 = vmatpush1.bf16.msra.mxu0 %v849
      %868 = vmatprep.subr.bf16.mxu0 %v840
      %869 = vmatpush1.bf16.msra.mxu0 %v839
      %870 = vmatprep.subr.bf16.mxu0 0
      %871 = vmatpush2.bf16.msra.mxu0 0
      %872 = vmatprep.subr.bf16.mxu0 0
      %873 = vmatpush2.bf16.msra.mxu0 0
      %874 = vmatprep.subr.bf16.mxu0 0
      %875 = vmatpush2.bf16.msra.mxu0 0
      %876 = vmatprep.subr.bf16.mxu0 0
      %877 = vmatpush2.bf16.msra.mxu0 0
      %878 = vmatprep.subr.bf16.mxu0 0
      %879 = vmatpush2.bf16.msra.mxu0 0
      %880 = vmatprep.subr.bf16.mxu0 0
      %881 = vmatpush2.bf16.msra.mxu0 0
      %882 = vmatprep.subr.bf16.mxu0 0
      %883 = vmatpush2.bf16.msra.mxu0 0
      %884 = vmatprep.subr.bf16.mxu0 0
      %885 = vmatpush2.bf16.msra.mxu0 0
      %886 = vmatprep.mubr.bf16.mxu0 0
      %887 = vmatmul.mubr.bf16.gmra.mxu0 %v846
      %v888 = vpop.f32.mrf.mxu0
      %v889 = vadd.f32 0.0, %v888
      %v890 = vpop.f32.mrf.mxu0
      %v891 = vadd.f32 0.0, %v890
      %v892 = vpop.f32.mrf.mxu0
      %v893 = vpop.f32.mrf.mxu0
      %894 = vdwg.mxu0
      %v895 = vadd.f32 %v819, %v889
      %v896 = vadd.f32 %v821, %v891
      %v897 = vld [vmem:[%s5] sm:$0xff]
      %899 = vset.pattern.permute.xlu0 0
      %900 = vperm.xlu0 %899, %v897
      %v901 = vpop.permute.xlu0 %900
      %v903 = vadd.f32 %v895, %v901
      %v904 = vadd.f32 %v896, %v901
      %v905 = vmax.f32 %v903, 0.0
      %v906 = vmax.f32 %v904, 0.0
      %907 = vst [vmem:[%s251] sm:$0xff] %v905
      %908 = vst [vmem:[%s251 + $0x8] sm:$0xff] %v906
      %p909 = scmp.lt.s32.totalorder %s17, 1
      %s910 = scalar_select %p909, %s17, 1
      %s911 = smul.addr %s910, 2
      %s912 = smul.addr %s911, 8
      %s913 = scalar_lea.vmem %s6, %s912
      // Predicated region
      $region45: #{double_conv_forward.1} parent=43 // pred_check
        %p914 = pneg %p166
      $region46: #{double_conv_forward.1} parent=43 // pred_check_branch
        %916 = sbr.rel (%p914) target = $region48
      $region47: #{double_conv_forward.1} parent=43 // pred_region
        _
      $region48: #{double_conv_forward.1} parent=43 // pred_fallthru
        _
    $region44: #{double_conv_forward.1} parent=5 // pred_fallthru
      _
    %p917 = scmp.le.s32.totalorder 2, %s12
    // Predicated region
    $region49: #{double_conv_forward.1} parent=5 // pred_check
      %p918 = pneg %p917
    $region50: #{double_conv_forward.1} parent=5 // pred_check_branch
      %920 = sbr.rel (%p918) target = $region52
    $region51: #{double_conv_forward.1} parent=5 // pred_region
      %s921 = ssub.s32 %s12, 2
      // Predicated region
      $region53: #{double_conv_forward.1} parent=51 // pred_check
        %p922 = pneg %p172
      $region54: #{double_conv_forward.1} parent=51 // pred_check_branch
        %924 = sbr.rel (%p922) target = $region56
      $region55: #{double_conv_forward.1} parent=51 // pred_region
        %p925 = scmp.lt.s32.totalorder %s18, 1
        %s926 = scalar_select %p925, %s18, 1
        %s927 = smul.addr %s926, 2
        %s928 = smul.addr %s927, 8
        %s929 = scalar_lea.vmem %s6, %s928
      $region56: #{double_conv_forward.1} parent=51 // pred_fallthru
        _
    $region52: #{double_conv_forward.1} parent=5 // pred_fallthru
      _
  $region6: #{double_conv_forward.1} parent=0 // loop_footer
    %s16 = sadd.s32 1, %s12
  $region7: #{double_conv_forward.1} parent=0 // loop_footer_branch
    %11 = sbr.rel target = $region3
  $region8: #{double_conv_forward.1} parent=0 // loop_exit
    _

</llo_original>
